<compile_context>
chip_gen: v6e
topology: v6e:2x2x1
jax: 0.10.0
libtpu: 0.0.40
codegen_flags: <defaults>
</compile_context>

<pallas_src>
import jax
import jax.numpy as jnp
from jax.experimental import pallas as pl
from jax.experimental.pallas import tpu as pltpu


def _round_up(n, m):
    return ((n + m - 1) // m) * m


def _cdiv(a, b):
    return (a + b - 1) // b


def mlp_kernel(x_ref, w1_ref, b1_ref, w2_ref, b2_ref, o_ref):
    # Layer 1: (TM, d_in) @ (d_in, Hp) on the MXU, f32 accumulate.
    x = x_ref[...].astype(w1_ref.dtype)            # cast to compute dtype in-kernel
    h = jnp.dot(x, w1_ref[...], preferred_element_type=jnp.float32)
    h = jnp.maximum(h + b1_ref[...].astype(jnp.float32), 0.0)   # f32 epilogue
    # Layer 2: (TM, Hp) @ (Hp, Dp) on the MXU, f32 accumulate.
    y = jnp.dot(h.astype(w2_ref.dtype), w2_ref[...],
                preferred_element_type=jnp.float32)
    o_ref[...] = (y + b2_ref[...].astype(jnp.float32)).astype(o_ref.dtype)


def prepare_sequence_model_params(w1, b1, w2, b2, compute_dtype=jnp.bfloat16):
    """Pad hidden/output dims to lane multiples (128) and cast weights to the MXU
    compute dtype ONCE, outside the per-forward-call path. Biases stay f32.

    Weights follow PyTorch nn.Linear semantics stored as (in, out):
        y = relu(x @ w1 + b1) @ w2 + b2
    Padding is exact: padded hidden units have zero weights/bias (ReLU(0)=0 and
    zero outgoing rows); padded output columns are sliced off after the kernel.
    """
    d_in, hidden = w1.shape
    d_out = w2.shape[1]
    h_p = _round_up(hidden, 128)
    d_out_p = _round_up(d_out, 128)
    w1p = jnp.pad(w1.astype(compute_dtype), ((0, 0), (0, h_p - hidden)))
    b1p = jnp.pad(b1.astype(jnp.float32), (0, h_p - hidden)).reshape(1, h_p)
    w2p = jnp.pad(w2.astype(compute_dtype),
                  ((0, h_p - hidden), (0, d_out_p - d_out)))
    b2p = jnp.pad(b2.astype(jnp.float32), (0, d_out_p - d_out)).reshape(1, d_out_p)
    return {"w1": w1p, "b1": b1p, "w2": w2p, "b2": b2p,
            "d_in": d_in, "hidden": hidden, "d_out": d_out}


# Conservative per-call VMEM budget for tiles (v7x has only 64 MiB physical).
_VMEM_TILE_BUDGET = 40 * 1024 * 1024


def sequence_model_forward(x, params, *, block_rows=512):
    """x: (B, input_dim); params from prepare_sequence_model_params.
    Returns (B, output_dim) in x.dtype."""
    B, d_in = x.shape
    assert d_in == params["d_in"], "input feature dim mismatch"
    w1p, b1p, w2p, b2p = params["w1"], params["b1"], params["w2"], params["b2"]
    h_p = w1p.shape[1]
    d_out_p = w2p.shape[1]
    hidden = params["hidden"]
    d_out = params["d_out"]

    x_bytes = jnp.dtype(x.dtype).itemsize
    w_bytes = jnp.dtype(w1p.dtype).itemsize
    weight_bytes = sum(int(a.size) * jnp.dtype(a.dtype).itemsize
                       for a in (w1p, b1p, w2p, b2p))

    # ---- batch tile: multiple of 8 sublanes, VMEM-budgeted, >=2 grid steps ----
    # Per-row VMEM: double-buffered x + out tiles, plus the f32 h/y temporaries.
    per_row = (2 * d_in * x_bytes + 2 * d_out_p * x_bytes
               + 4 * h_p + 4 * d_out_p)
    avail = max(_VMEM_TILE_BUDGET - 2 * weight_bytes, 8 * per_row)
    tm_vmem = max(8, (avail // per_row) // 8 * 8)
    tm_req = _round_up(max(block_rows, 8), 8)
    tm_batch = _round_up(_cdiv(B, 2), 8) if B > 8 else _round_up(B, 8)
    tm = max(8, min(tm_req, tm_batch, tm_vmem))
    b_p = _round_up(B, tm)

    xp = x if b_p == B else jnp.pad(x, ((0, b_p - B), (0, 0)))
    grid = (b_p // tm,)

    # ---- scheduling hints (true, unpadded dims) ----
    cost = pl.CostEstimate(
        flops=2 * B * (d_in * hidden + hidden * d_out),
        transcendentals=0,
        bytes_accessed=(x.size * x_bytes
                        + (d_in * hidden + hidden * d_out) * w_bytes
                        + (hidden + d_out) * 4
                        + B * d_out * x_bytes),
    )
    vmem_est = 2 * weight_bytes + tm * per_row
    vmem_limit = int(min(max(32 * 1024 * 1024, vmem_est + 4 * 1024 * 1024),
                         64 * 1024 * 1024))

    out_shape = jax.ShapeDtypeStruct((b_p, d_out_p), x.dtype)

    def build(use_buffered):
        def resident(shape):
            idx = lambda i: (0,) * len(shape)
            if use_buffered:
                # Grid-invariant operand: single VMEM buffer, loaded once.
                return pl.BlockSpec(shape, idx, pipeline_mode=pl.Buffered(1))
            return pl.BlockSpec(shape, idx)

        return pl.pallas_call(
            mlp_kernel,
            out_shape=out_shape,
            grid_spec=pltpu.PrefetchScalarGridSpec(
                num_scalar_prefetch=0,
                grid=grid,
                in_specs=[
                    # x streams per batch block (full, unpadded feature dim).
                    pl.BlockSpec((tm, d_in), lambda i: (i, 0)),
                    resident((d_in, h_p)),
                    resident((1, h_p)),
                    resident((h_p, d_out_p)),
                    resident((1, d_out_p)),
                ],
                out_specs=pl.BlockSpec((tm, d_out_p), lambda i: (i, 0)),
            ),
            compiler_params=pltpu.CompilerParams(
                dimension_semantics=("parallel",),
                vmem_limit_bytes=vmem_limit,
            ),
            cost_estimate=cost,
        )

    try:
        out_p = build(True)(xp, w1p, b1p, w2p, b2p)
    except Exception:
        # pipeline_mode=pl.Buffered not supported on this jax version; fall back
        # to default (double-buffered) resident specs.
        out_p = build(False)(xp, w1p, b1p, w2p, b2p)

    # Slice off batch / lane padding.
    return out_p[:B, :d_out]


if __name__ == "__main__":
    # Deterministic synthetic params + input (no checkpoint load).
    input_dim, hidden_dim, output_dim = 16, 32, 8
    batch = 4  # small batch of feature vectors

    key = jax.random.PRNGKey(0)
    kx, k1, k2, k3, k4 = jax.random.split(key, 5)

    x = jax.random.normal(kx, (batch, input_dim), dtype=jnp.float32)
    # Roughly match PyTorch's default Linear init (uniform +/- 1/sqrt(fan_in)).
    w1 = jax.random.uniform(k1, (input_dim, hidden_dim), jnp.float32,
                            -1.0 / jnp.sqrt(input_dim), 1.0 / jnp.sqrt(input_dim))
    b1 = jax.random.uniform(k2, (hidden_dim,), jnp.float32,
                            -1.0 / jnp.sqrt(input_dim), 1.0 / jnp.sqrt(input_dim))
    w2 = jax.random.uniform(k3, (hidden_dim, output_dim), jnp.float32,
                            -1.0 / jnp.sqrt(hidden_dim), 1.0 / jnp.sqrt(hidden_dim))
    b2 = jax.random.uniform(k4, (output_dim,), jnp.float32,
                            -1.0 / jnp.sqrt(hidden_dim), 1.0 / jnp.sqrt(hidden_dim))

    # Pad / cast weights once, outside the per-call path.
    params = prepare_sequence_model_params(w1, b1, w2, b2,
                                           compute_dtype=jnp.bfloat16)

    out = sequence_model_forward(x, params)
    out = jax.block_until_ready(out)

    # Mixed-precision reference mirroring the kernel's bf16-MXU / f32-accumulate.
    cd = jnp.bfloat16
    h_ref = jnp.maximum(
        jnp.dot(x.astype(cd), w1.astype(cd),
                preferred_element_type=jnp.float32) + b1, 0.0)
    ref_mp = jnp.dot(h_ref.astype(cd), w2.astype(cd),
                     preferred_element_type=jnp.float32) + b2
    # Full-f32 reference for end-to-end semantics (looser, bf16 tolerance).
    ref_f32 = jnp.maximum(x @ w1 + b1, 0.0) @ w2 + b2

    assert out.shape == (batch, output_dim)
    assert jnp.allclose(out, ref_mp, atol=1e-2, rtol=1e-2), "mismatch vs bf16 ref"
    assert jnp.allclose(out, ref_f32, atol=7e-2, rtol=7e-2), "mismatch vs f32 ref"

    print("KERNEL_OK")
</pallas_src>

<mosaic_0001>
module attributes {stable_mosaic.version = 11 : i64} {
  func.func @mlp_kernel(%arg0: i32, %arg1: memref<8x16xf32, #tpu.memory_space<vmem>>, %arg2: memref<16x128xbf16, #tpu.memory_space<vmem>>, %arg3: memref<1x128xf32, #tpu.memory_space<vmem>>, %arg4: memref<128x128xbf16, #tpu.memory_space<vmem>>, %arg5: memref<1x128xf32, #tpu.memory_space<vmem>>, %arg6: memref<8x128xf32, #tpu.memory_space<vmem>>) attributes {dimension_semantics = [#tpu.dimension_semantics<parallel>], iteration_bounds = array<i64: 1>, scalar_prefetch = 0 : i64, scratch_operands = 0 : i64, tpu.core_type = #tpu.core_type<tc>, window_params = [{transform_indices = @transform_0, window_bounds = array<i64: 8, 16>}, {pipeline_mode = #tpu.pipeline_mode<synchronous>, transform_indices = @transform_1, window_bounds = array<i64: 16, 128>}, {pipeline_mode = #tpu.pipeline_mode<synchronous>, transform_indices = @transform_2, window_bounds = array<i64: 1, 128>}, {pipeline_mode = #tpu.pipeline_mode<synchronous>, transform_indices = @transform_3, window_bounds = array<i64: 128, 128>}, {pipeline_mode = #tpu.pipeline_mode<synchronous>, transform_indices = @transform_4, window_bounds = array<i64: 1, 128>}, {transform_indices = @transform_5, window_bounds = array<i64: 8, 128>}]} {
    %c0 = arith.constant 0 : index
    %c0_0 = arith.constant 0 : index
    %0 = vector.load %arg1[%c0, %c0_0] : memref<8x16xf32, #tpu.memory_space<vmem>>, vector<8x16xf32>
    %1 = arith.truncf %0 : vector<8x16xf32> to vector<8x16xbf16>
    %c0_1 = arith.constant 0 : index
    %c0_2 = arith.constant 0 : index
    %2 = vector.load %arg2[%c0_1, %c0_2] : memref<16x128xbf16, #tpu.memory_space<vmem>>, vector<16x128xbf16>
    %cst = arith.constant dense<0.000000e+00> : vector<8x128xf32>
    %3 = tpu.matmul %1, %2, %cst {dimension_numbers = #tpu.dot_dimension_numbers<[1], [0], [0], [1], [0, 0, 1, 1], [], []>} : vector<8x16xbf16>, vector<16x128xbf16>, vector<8x128xf32> -> vector<8x128xf32>
    %c0_3 = arith.constant 0 : index
    %c0_4 = arith.constant 0 : index
    %4 = vector.load %arg3[%c0_3, %c0_4] : memref<1x128xf32, #tpu.memory_space<vmem>>, vector<1x128xf32>
    %5 = vector.broadcast %4 : vector<1x128xf32> to vector<8x128xf32>
    %6 = arith.addf %3, %5 : vector<8x128xf32>
    %cst_5 = arith.constant 0.000000e+00 : f32
    %7 = vector.broadcast %cst_5 : f32 to vector<8x128xf32>
    %8 = arith.maximumf %6, %7 : vector<8x128xf32>
    %9 = arith.truncf %8 : vector<8x128xf32> to vector<8x128xbf16>
    %c0_6 = arith.constant 0 : index
    %c0_7 = arith.constant 0 : index
    %10 = vector.load %arg4[%c0_6, %c0_7] : memref<128x128xbf16, #tpu.memory_space<vmem>>, vector<128x128xbf16>
    %cst_8 = arith.constant dense<0.000000e+00> : vector<8x128xf32>
    %11 = tpu.matmul %9, %10, %cst_8 {dimension_numbers = #tpu.dot_dimension_numbers<[1], [0], [0], [1], [0, 0, 1, 1], [], []>} : vector<8x128xbf16>, vector<128x128xbf16>, vector<8x128xf32> -> vector<8x128xf32>
    %c0_9 = arith.constant 0 : index
    %c0_10 = arith.constant 0 : index
    %12 = vector.load %arg5[%c0_9, %c0_10] : memref<1x128xf32, #tpu.memory_space<vmem>>, vector<1x128xf32>
    %13 = vector.broadcast %12 : vector<1x128xf32> to vector<8x128xf32>
    %14 = arith.addf %11, %13 : vector<8x128xf32>
    %c0_11 = arith.constant 0 : index
    %c0_12 = arith.constant 0 : index
    %15 = vector.load %arg6[%c0_11, %c0_12] : memref<8x128xf32, #tpu.memory_space<vmem>>, vector<8x128xf32>
    tpu.vector_store %arg6[%c0_11, %c0_12], %14 {strides = array<i32>} : memref<8x128xf32, #tpu.memory_space<vmem>>, vector<8x128xf32>,
    return
  }
  func.func @transform_0(%arg0: i32) -> (i32, i32) {
    %c0_i32 = arith.constant 0 : i32
    %c0_i32_0 = arith.constant 0 : i32
    return %arg0, %c0_i32 : i32, i32
  }
  func.func @transform_1(%arg0: i32) -> (i32, i32) {
    %c0_i32 = arith.constant 0 : i32
    %c0_i32_0 = arith.constant 0 : i32
    %c0_i32_1 = arith.constant 0 : i32
    return %c0_i32, %c0_i32_0 : i32, i32
  }
  func.func @transform_2(%arg0: i32) -> (i32, i32) {
    %c0_i32 = arith.constant 0 : i32
    %c0_i32_0 = arith.constant 0 : i32
    %c0_i32_1 = arith.constant 0 : i32
    return %c0_i32, %c0_i32_0 : i32, i32
  }
  func.func @transform_3(%arg0: i32) -> (i32, i32) {
    %c0_i32 = arith.constant 0 : i32
    %c0_i32_0 = arith.constant 0 : i32
    %c0_i32_1 = arith.constant 0 : i32
    return %c0_i32, %c0_i32_0 : i32, i32
  }
  func.func @transform_4(%arg0: i32) -> (i32, i32) {
    %c0_i32 = arith.constant 0 : i32
    %c0_i32_0 = arith.constant 0 : i32
    %c0_i32_1 = arith.constant 0 : i32
    return %c0_i32, %c0_i32_0 : i32, i32
  }
  func.func @transform_5(%arg0: i32) -> (i32, i32) {
    %c0_i32 = arith.constant 0 : i32
    %c0_i32_0 = arith.constant 0 : i32
    return %arg0, %c0_i32 : i32, i32
  }
}

module attributes {stable_mosaic.version = 11 : i64} {
  func.func @mlp_kernel(%arg0: i32, %arg1: memref<8x16xf32, #tpu.memory_space<vmem>>, %arg2: memref<16x128xbf16, #tpu.memory_space<vmem>>, %arg3: memref<1x128xf32, #tpu.memory_space<vmem>>, %arg4: memref<128x128xbf16, #tpu.memory_space<vmem>>, %arg5: memref<1x128xf32, #tpu.memory_space<vmem>>, %arg6: memref<8x128xf32, #tpu.memory_space<vmem>>) attributes {dimension_semantics = [#tpu.dimension_semantics<parallel>], iteration_bounds = array<i64: 1>, scalar_prefetch = 0 : i64, scratch_operands = 0 : i64, tpu.core_type = #tpu.core_type<tc>, window_params = [{transform_indices = @transform_0, window_bounds = array<i64: 8, 16>}, {pipeline_mode = #tpu.pipeline_mode<synchronous>, transform_indices = @transform_1, window_bounds = array<i64: 16, 128>}, {pipeline_mode = #tpu.pipeline_mode<synchronous>, transform_indices = @transform_2, window_bounds = array<i64: 1, 128>}, {pipeline_mode = #tpu.pipeline_mode<synchronous>, transform_indices = @transform_3, window_bounds = array<i64: 128, 128>}, {pipeline_mode = #tpu.pipeline_mode<synchronous>, transform_indices = @transform_4, window_bounds = array<i64: 1, 128>}, {transform_indices = @transform_5, window_bounds = array<i64: 8, 128>}]} {
    %c0 = arith.constant 0 : index
    %c0_0 = arith.constant 0 : index
    %0 = vector.load %arg1[%c0, %c0_0] : memref<8x16xf32, #tpu.memory_space<vmem>>, vector<8x16xf32>
    %1 = arith.truncf %0 : vector<8x16xf32> to vector<8x16xbf16>
    %c0_1 = arith.constant 0 : index
    %c0_2 = arith.constant 0 : index
    %2 = vector.load %arg2[%c0_1, %c0_2] : memref<16x128xbf16, #tpu.memory_space<vmem>>, vector<16x128xbf16>
    %cst = arith.constant dense<0.000000e+00> : vector<8x128xf32>
    %3 = tpu.matmul %1, %2, %cst {dimension_numbers = #tpu.dot_dimension_numbers<[1], [0], [0], [1], [0, 0, 1, 1], [], []>} : vector<8x16xbf16>, vector<16x128xbf16>, vector<8x128xf32> -> vector<8x128xf32>
    %c0_3 = arith.constant 0 : index
    %c0_4 = arith.constant 0 : index
    %4 = vector.load %arg3[%c0_3, %c0_4] : memref<1x128xf32, #tpu.memory_space<vmem>>, vector<1x128xf32>
    %5 = vector.broadcast %4 : vector<1x128xf32> to vector<8x128xf32>
    %6 = arith.addf %3, %5 : vector<8x128xf32>
    %cst_5 = arith.constant 0.000000e+00 : f32
    %7 = vector.broadcast %cst_5 : f32 to vector<8x128xf32>
    %8 = arith.maximumf %6, %7 : vector<8x128xf32>
    %9 = arith.truncf %8 : vector<8x128xf32> to vector<8x128xbf16>
    %c0_6 = arith.constant 0 : index
    %c0_7 = arith.constant 0 : index
    %10 = vector.load %arg4[%c0_6, %c0_7] : memref<128x128xbf16, #tpu.memory_space<vmem>>, vector<128x128xbf16>
    %cst_8 = arith.constant dense<0.000000e+00> : vector<8x128xf32>
    %11 = tpu.matmul %9, %10, %cst_8 {dimension_numbers = #tpu.dot_dimension_numbers<[1], [0], [0], [1], [0, 0, 1, 1], [], []>} : vector<8x128xbf16>, vector<128x128xbf16>, vector<8x128xf32> -> vector<8x128xf32>
    %c0_9 = arith.constant 0 : index
    %c0_10 = arith.constant 0 : index
    %12 = vector.load %arg5[%c0_9, %c0_10] : memref<1x128xf32, #tpu.memory_space<vmem>>, vector<1x128xf32>
    %13 = vector.broadcast %12 : vector<1x128xf32> to vector<8x128xf32>
    %14 = arith.addf %11, %13 : vector<8x128xf32>
    %c0_11 = arith.constant 0 : index
    %c0_12 = arith.constant 0 : index
    %15 = vector.load %arg6[%c0_11, %c0_12] : memref<8x128xf32, #tpu.memory_space<vmem>>, vector<8x128xf32>
    tpu.vector_store %arg6[%c0_11, %c0_12], %14 {strides = array<i32>} : memref<8x128xf32, #tpu.memory_space<vmem>>, vector<8x128xf32>,
    return
  }
  func.func @transform_0(%arg0: i32) -> (i32, i32) {
    %c0_i32 = arith.constant 0 : i32
    %c0_i32_0 = arith.constant 0 : i32
    return %arg0, %c0_i32 : i32, i32
  }
  func.func @transform_1(%arg0: i32) -> (i32, i32) {
    %c0_i32 = arith.constant 0 : i32
    %c0_i32_0 = arith.constant 0 : i32
    %c0_i32_1 = arith.constant 0 : i32
    return %c0_i32, %c0_i32_0 : i32, i32
  }
  func.func @transform_2(%arg0: i32) -> (i32, i32) {
    %c0_i32 = arith.constant 0 : i32
    %c0_i32_0 = arith.constant 0 : i32
    %c0_i32_1 = arith.constant 0 : i32
    return %c0_i32, %c0_i32_0 : i32, i32
  }
  func.func @transform_3(%arg0: i32) -> (i32, i32) {
    %c0_i32 = arith.constant 0 : i32
    %c0_i32_0 = arith.constant 0 : i32
    %c0_i32_1 = arith.constant 0 : i32
    return %c0_i32, %c0_i32_0 : i32, i32
  }
  func.func @transform_4(%arg0: i32) -> (i32, i32) {
    %c0_i32 = arith.constant 0 : i32
    %c0_i32_0 = arith.constant 0 : i32
    %c0_i32_1 = arith.constant 0 : i32
    return %c0_i32, %c0_i32_0 : i32, i32
  }
  func.func @transform_5(%arg0: i32) -> (i32, i32) {
    %c0_i32 = arith.constant 0 : i32
    %c0_i32_0 = arith.constant 0 : i32
    return %arg0, %c0_i32 : i32, i32
  }
}

</mosaic_0001>

<llo_original>
// kernel: tpu_custom_call.1
$region0: #{tpu_custom_call.1}
  #allocation0 [shape = 'u32[]', space=smem, size = 0x4, offset = 0x4, fixed_abs, tag = 'smem constant byte address 0x4 - core index']
  #allocation1 [shape = 'u32[144,128]{1,0:T(1,128)}', space=vmem, size = 0x12000, scoped, tag = 'internal scratch']
  %s0 = inlined_call_operand.hbm [shape: f32[8,16], index: 0, kind: input, shape index: {}]
  %s1 = inlined_call_operand.hbm [shape: bf16[16,128], index: 1, kind: input, shape index: {}]
  %s2 = inlined_call_operand.vmem [shape: f32[1,128], index: 2, kind: input, shape index: {}]
  %s3 = inlined_call_operand.hbm [shape: bf16[128,128], index: 3, kind: input, shape index: {}]
  %s4 = inlined_call_operand.vmem [shape: f32[1,128], index: 4, kind: input, shape index: {}]
  %s5 = inlined_call_operand.hbm [shape: f32[8,128], index: 5, kind: output, shape index: {}]
  %s6 = sld [smem:[#allocation0]]
  $region42: #{tpu_custom_call.1} parent=0
    _
  %s8 = ssub.s32 1, %s6
  %s9 = scalar_select 0, %s8, %s6
  $region1: #{tpu_custom_call.1} parent=0
    #allocation2 [shape = 'u8[4096]{0}', space=vmem, size = 0x1000, scoped, tag = 'input window, operand 0, single buffered']
    #allocation3 [shape = 's32[1]{0}', space=sflag, size = 0x4, scoped, tag = 'scoped memory for tpu_custom_call.1']
    #allocation4 [shape = 's32[1]{0}', space=sflag, size = 0x4, scoped, tag = 'scoped memory for tpu_custom_call.1']
    #allocation5 [shape = 'u8[4096]{0}', space=vmem, size = 0x1000, scoped, tag = 'input window, operand 1, single buffered']
    #allocation6 [shape = 's32[1]{0}', space=sflag, size = 0x4, scoped, tag = 'scoped memory for tpu_custom_call.1']
    #allocation7 [shape = 'u8[32768]{0}', space=vmem, size = 0x8000, scoped, tag = 'input window, operand 3, single buffered']
    #allocation8 [shape = 'u8[4096]{0}', space=vmem, size = 0x1000, scoped, tag = 'output window, operand 0, single buffered']
    %10 = vsyncpa [#allocation3], 0
    %11 = vsyncpa [#allocation6], 0
    %12 = vsyncpa [#allocation4], 0
    // Predicated region
    $region2: #{tpu_custom_call.1} parent=1 // pred_check
      _
    $region3: #{tpu_custom_call.1} parent=1 // pred_check_branch
      %14 = sbr.rel (0) target = $region5
    $region4: #{tpu_custom_call.1} parent=1 // pred_region
      %s16 = ssub.s32 128, 128
      %17 = vsyncadd [#allocation3], %s16
      %s19 = sshll.u32 [#allocation2], 4
      %s20 = int_to_ptr.vmem [resolvable:$true] %s19
      %22 = dma.hbm_to_vmem [thread:$0]  %s0, 128, %s20, [#allocation3]
    $region5: #{tpu_custom_call.1} parent=1 // pred_fallthru
      _
    // Predicated region
    $region6: #{tpu_custom_call.1} parent=1 // pred_check
      _
    $region7: #{tpu_custom_call.1} parent=1 // pred_check_branch
      %24 = sbr.rel (0) target = $region9
    $region8: #{tpu_custom_call.1} parent=1 // pred_region
      %s26 = ssub.s32 128, 128
      %27 = vsyncadd [#allocation6], %s26
      %s28 = sshll.u32 [#allocation5], 4
      %s29 = int_to_ptr.vmem [resolvable:$true] %s28
      %34 = dma.hbm_to_vmem [thread:$0]  %s1, 128, %s29, [#allocation6], 64, 64, 4
    $region9: #{tpu_custom_call.1} parent=1 // pred_fallthru
      _
    // Predicated region
    $region10: #{tpu_custom_call.1} parent=1 // pred_check
      _
    $region11: #{tpu_custom_call.1} parent=1 // pred_check_branch
      %36 = sbr.rel (0) target = $region13
    $region12: #{tpu_custom_call.1} parent=1 // pred_region
      _
    $region13: #{tpu_custom_call.1} parent=1 // pred_fallthru
      _
    // Predicated region
    $region14: #{tpu_custom_call.1} parent=1 // pred_check
      _
    $region15: #{tpu_custom_call.1} parent=1 // pred_check_branch
      %38 = sbr.rel (0) target = $region17
    $region16: #{tpu_custom_call.1} parent=1 // pred_region
      %s40 = ssub.s32 1024, 1024
      %41 = vsyncadd [#allocation6], %s40
      %s42 = sshll.u32 [#allocation7], 4
      %s43 = int_to_ptr.vmem [resolvable:$true] %s42
      %48 = dma.hbm_to_vmem [thread:$0]  %s3, 1024, %s43, [#allocation6], 64, 64, 4
    $region17: #{tpu_custom_call.1} parent=1 // pred_fallthru
      _
    // Predicated region
    $region18: #{tpu_custom_call.1} parent=1 // pred_check
      _
    $region19: #{tpu_custom_call.1} parent=1 // pred_check_branch
      %50 = sbr.rel (0) target = $region21
    $region20: #{tpu_custom_call.1} parent=1 // pred_region
      _
    $region21: #{tpu_custom_call.1} parent=1 // pred_fallthru
      _
    // Predicated region
    $region22: #{tpu_custom_call.1} parent=1 // pred_check
      _
    $region23: #{tpu_custom_call.1} parent=1 // pred_check_branch
      %52 = sbr.rel (0) target = $region25
    $region24: #{tpu_custom_call.1} parent=1 // pred_region
      %53 = dma.done [#allocation3], 128
    $region25: #{tpu_custom_call.1} parent=1 // pred_fallthru
      _
    // Predicated region
    $region26: #{tpu_custom_call.1} parent=1 // pred_check
      _
    $region27: #{tpu_custom_call.1} parent=1 // pred_check_branch
      %55 = sbr.rel (0) target = $region29
    $region28: #{tpu_custom_call.1} parent=1 // pred_region
      %56 = dma.done [#allocation6], 128
    $region29: #{tpu_custom_call.1} parent=1 // pred_fallthru
      _
    // Predicated region
    $region30: #{tpu_custom_call.1} parent=1 // pred_check
      _
    $region31: #{tpu_custom_call.1} parent=1 // pred_check_branch
      %58 = sbr.rel (0) target = $region33
    $region32: #{tpu_custom_call.1} parent=1 // pred_region
      %59 = dma.done [#allocation6], 1024
    $region33: #{tpu_custom_call.1} parent=1 // pred_fallthru
      _
    %v61 = vld [vmem:[#allocation2] sm:$0xff]
    %v62 = vpack.c.bf16 %v61, %v61
    %v63 = vld [vmem:[#allocation5] sm:$0xf]
    %v64 = vld [vmem:[#allocation5 + $0x4] sm:$0xf]
    %v65 = vld [vmem:[%s2] sm:$0x1]
    %v67 = vlaneseq
    %v68 = vshrl.u32 %v67, 7
    %v69 = vsub.s32 0, %v68
    %v70 = vrot.slane %v65, %v69
    %v74 = vunpack.c.l.b16 %v63
    %v75 = vunpack.c.l.b16 %v64
    %v76 = vpack.c.b16 %v75, %v74
    %vm78 = vcmask 130048
    %v80 = vsel %vm78, %v62, 0
    %82 = vmatprep.subr.bf16.mxu0 0
    %83 = vmatpush1.bf16.msra.mxu0 0
    %84 = vmatprep.subr.bf16.mxu0 0
    %85 = vmatpush1.bf16.msra.mxu0 0
    %86 = vmatprep.subr.bf16.mxu0 0
    %87 = vmatpush1.bf16.msra.mxu0 0
    %88 = vmatprep.subr.bf16.mxu0 0
    %89 = vmatpush1.bf16.msra.mxu0 0
    %90 = vmatprep.subr.bf16.mxu0 0
    %91 = vmatpush1.bf16.msra.mxu0 0
    %92 = vmatprep.subr.bf16.mxu0 0
    %93 = vmatpush1.bf16.msra.mxu0 0
    %94 = vmatprep.subr.bf16.mxu0 0
    %95 = vmatpush1.bf16.msra.mxu0 0
    %96 = vmatprep.subr.bf16.mxu0 0
    %97 = vmatpush1.bf16.msra.mxu0 %v76
    %98 = vmatprep.subr.bf16.mxu0 0
    %99 = vmatpush2.bf16.msra.mxu0 0
    %100 = vmatprep.subr.bf16.mxu0 0
    %101 = vmatpush2.bf16.msra.mxu0 0
    %102 = vmatprep.subr.bf16.mxu0 0
    %103 = vmatpush2.bf16.msra.mxu0 0
    %104 = vmatprep.subr.bf16.mxu0 0
    %105 = vmatpush2.bf16.msra.mxu0 0
    %106 = vmatprep.subr.bf16.mxu0 0
    %107 = vmatpush2.bf16.msra.mxu0 0
    %108 = vmatprep.subr.bf16.mxu0 0
    %109 = vmatpush2.bf16.msra.mxu0 0
    %110 = vmatprep.subr.bf16.mxu0 0
    %111 = vmatpush2.bf16.msra.mxu0 0
    %112 = vmatprep.subr.bf16.mxu0 0
    %113 = vmatpush2.bf16.msra.mxu0 0
    %114 = vmatprep.mubr.bf16.mxu0 0
    %115 = vmatmul.mubr.bf16.gmra.mxu0 %v80
    %v116 = vpop.f32.mrf.mxu0
    %v117 = vadd.f32 %v70, %v116
    %v118 = vpop.f32.mrf.mxu0
    %v119 = vpop.f32.mrf.mxu0
    %v120 = vpop.f32.mrf.mxu0
    %121 = vdwg.mxu0
    %v122 = vmax.f32 %v117, 0.0
    %v123 = vpack.c.bf16 %v122, %v122
    %v124 = vld [vmem:[#allocation7] sm:$0xf]
    %v125 = vld [vmem:[#allocation7 + $0x4] sm:$0xf]
    %v126 = vld [vmem:[#allocation7 + $0x8] sm:$0xf]
    %v127 = vld [vmem:[#allocation7 + $0xc] sm:$0xf]
    %v128 = vld [vmem:[#allocation7 + $0x10] sm:$0xf]
    %v129 = vld [vmem:[#allocation7 + $0x14] sm:$0xf]
    %v130 = vld [vmem:[#allocation7 + $0x18] sm:$0xf]
    %v131 = vld [vmem:[#allocation7 + $0x1c] sm:$0xf]
    %v132 = vld [vmem:[#allocation7 + $0x20] sm:$0xf]
    %v133 = vld [vmem:[#allocation7 + $0x24] sm:$0xf]
    %v134 = vld [vmem:[#allocation7 + $0x28] sm:$0xf]
    %v135 = vld [vmem:[#allocation7 + $0x2c] sm:$0xf]
    %v136 = vld [vmem:[#allocation7 + $0x30] sm:$0xf]
    %v137 = vld [vmem:[#allocation7 + $0x34] sm:$0xf]
    %v138 = vld [vmem:[#allocation7 + $0x38] sm:$0xf]
    %v139 = vld [vmem:[#allocation7 + $0x3c] sm:$0xf]
    %v140 = vld [vmem:[%s4] sm:$0x1]
    %v142 = vlaneseq
    %v143 = vshrl.u32 %v142, 7
    %v144 = vsub.s32 0, %v143
    %v145 = vrot.slane %v140, %v144
    %v163 = vunpack.c.l.b16 %v124
    %v164 = vunpack.c.l.b16 %v125
    %v165 = vunpack.c.l.b16 %v126
    %v166 = vunpack.c.l.b16 %v127
    %v167 = vunpack.c.l.b16 %v128
    %v168 = vunpack.c.l.b16 %v129
    %v169 = vunpack.c.l.b16 %v130
    %v170 = vunpack.c.l.b16 %v131
    %v171 = vunpack.c.l.b16 %v132
    %v172 = vunpack.c.l.b16 %v133
    %v173 = vunpack.c.l.b16 %v134
    %v174 = vunpack.c.l.b16 %v135
    %v175 = vunpack.c.l.b16 %v136
    %v176 = vunpack.c.l.b16 %v137
    %v177 = vunpack.c.l.b16 %v138
    %v178 = vunpack.c.l.b16 %v139
    %v179 = vpack.c.b16 %v164, %v163
    %v180 = vpack.c.b16 %v166, %v165
    %v181 = vpack.c.b16 %v168, %v167
    %v182 = vpack.c.b16 %v170, %v169
    %v183 = vpack.c.b16 %v172, %v171
    %v184 = vpack.c.b16 %v174, %v173
    %v185 = vpack.c.b16 %v176, %v175
    %v186 = vpack.c.b16 %v178, %v177
    %195 = vmatprep.subr.bf16.mxu0 0
    %196 = vmatpush1.bf16.msra.mxu0 %v186
    %197 = vmatprep.subr.bf16.mxu0 0
    %198 = vmatpush1.bf16.msra.mxu0 %v185
    %199 = vmatprep.subr.bf16.mxu0 0
    %200 = vmatpush1.bf16.msra.mxu0 %v184
    %201 = vmatprep.subr.bf16.mxu0 0
    %202 = vmatpush1.bf16.msra.mxu0 %v183
    %203 = vmatprep.subr.bf16.mxu0 0
    %204 = vmatpush1.bf16.msra.mxu0 %v182
    %205 = vmatprep.subr.bf16.mxu0 0
    %206 = vmatpush1.bf16.msra.mxu0 %v181
    %207 = vmatprep.subr.bf16.mxu0 0
    %208 = vmatpush1.bf16.msra.mxu0 %v180
    %209 = vmatprep.subr.bf16.mxu0 0
    %210 = vmatpush1.bf16.msra.mxu0 %v179
    %211 = vmatprep.subr.bf16.mxu0 0
    %212 = vmatpush2.bf16.msra.mxu0 0
    %213 = vmatprep.subr.bf16.mxu0 0
    %214 = vmatpush2.bf16.msra.mxu0 0
    %215 = vmatprep.subr.bf16.mxu0 0
    %216 = vmatpush2.bf16.msra.mxu0 0
    %217 = vmatprep.subr.bf16.mxu0 0
    %218 = vmatpush2.bf16.msra.mxu0 0
    %219 = vmatprep.subr.bf16.mxu0 0
    %220 = vmatpush2.bf16.msra.mxu0 0
    %221 = vmatprep.subr.bf16.mxu0 0
    %222 = vmatpush2.bf16.msra.mxu0 0
    %223 = vmatprep.subr.bf16.mxu0 0
    %224 = vmatpush2.bf16.msra.mxu0 0
    %225 = vmatprep.subr.bf16.mxu0 0
    %226 = vmatpush2.bf16.msra.mxu0 0
    %227 = vmatprep.mubr.bf16.mxu0 0
    %228 = vmatmul.mubr.bf16.gmra.mxu0 %v123
    %v229 = vpop.f32.mrf.mxu0
    %v230 = vadd.f32 %v145, %v229
    %v231 = vpop.f32.mrf.mxu0
    %v232 = vpop.f32.mrf.mxu0
    %v233 = vpop.f32.mrf.mxu0
    %234 = vdwg.mxu0
    %235 = vst [vmem:[#allocation8] sm:$0xff] %v230
    // Predicated region
    $region34: #{tpu_custom_call.1} parent=1 // pred_check
      _
    $region35: #{tpu_custom_call.1} parent=1 // pred_check_branch
      %237 = sbr.rel (0) target = $region37
    $region36: #{tpu_custom_call.1} parent=1 // pred_region
      %s239 = ssub.s32 128, 128
      %240 = vsyncadd [#allocation4], %s239
      %s242 = sshll.u32 [#allocation8], 4
      %s243 = int_to_ptr.vmem [resolvable:$true] %s242
      %245 = dma.vmem_to_hbm [thread:$0]  %s243, 128, %s5, [#allocation4]
    $region37: #{tpu_custom_call.1} parent=1 // pred_fallthru
      _
    // Predicated region
    $region38: #{tpu_custom_call.1} parent=1 // pred_check
      _
    $region39: #{tpu_custom_call.1} parent=1 // pred_check_branch
      %247 = sbr.rel (0) target = $region41
    $region40: #{tpu_custom_call.1} parent=1 // pred_region
      %248 = dma.done [#allocation4], 128
    $region41: #{tpu_custom_call.1} parent=1 // pred_fallthru
      _
    %249 = vsyncpa [#allocation3], 1
    %250 = vsyncpa [#allocation6], 1
    %251 = vsyncpa [#allocation4], 1

// kernel: tpu_custom_call.1
$region0: #{tpu_custom_call.1}
  #allocation0 [shape = 'u32[]', space=smem, size = 0x4, offset = 0x4, fixed_abs, tag = 'smem constant byte address 0x4 - core index']
  #allocation1 [shape = 'u32[144,128]{1,0:T(1,128)}', space=vmem, size = 0x12000, scoped, tag = 'internal scratch']
  %s0 = inlined_call_operand.hbm [shape: f32[8,16], index: 0, kind: input, shape index: {}]
  %s1 = inlined_call_operand.hbm [shape: bf16[16,128], index: 1, kind: input, shape index: {}]
  %s2 = inlined_call_operand.vmem [shape: f32[1,128], index: 2, kind: input, shape index: {}]
  %s3 = inlined_call_operand.hbm [shape: bf16[128,128], index: 3, kind: input, shape index: {}]
  %s4 = inlined_call_operand.vmem [shape: f32[1,128], index: 4, kind: input, shape index: {}]
  %s5 = inlined_call_operand.hbm [shape: f32[8,128], index: 5, kind: output, shape index: {}]
  %s6 = sld [smem:[#allocation0]]
  $region42: #{tpu_custom_call.1} parent=0
    _
  %s8 = ssub.s32 1, %s6
  %s9 = scalar_select 0, %s8, %s6
  $region1: #{tpu_custom_call.1} parent=0
    #allocation2 [shape = 'u8[4096]{0}', space=vmem, size = 0x1000, scoped, tag = 'input window, operand 0, single buffered']
    #allocation3 [shape = 's32[1]{0}', space=sflag, size = 0x4, scoped, tag = 'scoped memory for tpu_custom_call.1']
    #allocation4 [shape = 's32[1]{0}', space=sflag, size = 0x4, scoped, tag = 'scoped memory for tpu_custom_call.1']
    #allocation5 [shape = 'u8[4096]{0}', space=vmem, size = 0x1000, scoped, tag = 'input window, operand 1, single buffered']
    #allocation6 [shape = 's32[1]{0}', space=sflag, size = 0x4, scoped, tag = 'scoped memory for tpu_custom_call.1']
    #allocation7 [shape = 'u8[32768]{0}', space=vmem, size = 0x8000, scoped, tag = 'input window, operand 3, single buffered']
    #allocation8 [shape = 'u8[4096]{0}', space=vmem, size = 0x1000, scoped, tag = 'output window, operand 0, single buffered']
    %10 = vsyncpa [#allocation3], 0
    %11 = vsyncpa [#allocation6], 0
    %12 = vsyncpa [#allocation4], 0
    // Predicated region
    $region2: #{tpu_custom_call.1} parent=1 // pred_check
      _
    $region3: #{tpu_custom_call.1} parent=1 // pred_check_branch
      %14 = sbr.rel (0) target = $region5
    $region4: #{tpu_custom_call.1} parent=1 // pred_region
      %s16 = ssub.s32 128, 128
      %17 = vsyncadd [#allocation3], %s16
      %s19 = sshll.u32 [#allocation2], 4
      %s20 = int_to_ptr.vmem [resolvable:$true] %s19
      %22 = dma.hbm_to_vmem [thread:$0]  %s0, 128, %s20, [#allocation3]
    $region5: #{tpu_custom_call.1} parent=1 // pred_fallthru
      _
    // Predicated region
    $region6: #{tpu_custom_call.1} parent=1 // pred_check
      _
    $region7: #{tpu_custom_call.1} parent=1 // pred_check_branch
      %24 = sbr.rel (0) target = $region9
    $region8: #{tpu_custom_call.1} parent=1 // pred_region
      %s26 = ssub.s32 128, 128
      %27 = vsyncadd [#allocation6], %s26
      %s28 = sshll.u32 [#allocation5], 4
      %s29 = int_to_ptr.vmem [resolvable:$true] %s28
      %34 = dma.hbm_to_vmem [thread:$0]  %s1, 128, %s29, [#allocation6], 64, 64, 4
    $region9: #{tpu_custom_call.1} parent=1 // pred_fallthru
      _
    // Predicated region
    $region10: #{tpu_custom_call.1} parent=1 // pred_check
      _
    $region11: #{tpu_custom_call.1} parent=1 // pred_check_branch
      %36 = sbr.rel (0) target = $region13
    $region12: #{tpu_custom_call.1} parent=1 // pred_region
      _
    $region13: #{tpu_custom_call.1} parent=1 // pred_fallthru
      _
    // Predicated region
    $region14: #{tpu_custom_call.1} parent=1 // pred_check
      _
    $region15: #{tpu_custom_call.1} parent=1 // pred_check_branch
      %38 = sbr.rel (0) target = $region17
    $region16: #{tpu_custom_call.1} parent=1 // pred_region
      %s40 = ssub.s32 1024, 1024
      %41 = vsyncadd [#allocation6], %s40
      %s42 = sshll.u32 [#allocation7], 4
      %s43 = int_to_ptr.vmem [resolvable:$true] %s42
      %48 = dma.hbm_to_vmem [thread:$0]  %s3, 1024, %s43, [#allocation6], 64, 64, 4
    $region17: #{tpu_custom_call.1} parent=1 // pred_fallthru
      _
    // Predicated region
    $region18: #{tpu_custom_call.1} parent=1 // pred_check
      _
    $region19: #{tpu_custom_call.1} parent=1 // pred_check_branch
      %50 = sbr.rel (0) target = $region21
    $region20: #{tpu_custom_call.1} parent=1 // pred_region
      _
    $region21: #{tpu_custom_call.1} parent=1 // pred_fallthru
      _
    // Predicated region
    $region22: #{tpu_custom_call.1} parent=1 // pred_check
      _
    $region23: #{tpu_custom_call.1} parent=1 // pred_check_branch
      %52 = sbr.rel (0) target = $region25
    $region24: #{tpu_custom_call.1} parent=1 // pred_region
      %53 = dma.done [#allocation3], 128
    $region25: #{tpu_custom_call.1} parent=1 // pred_fallthru
      _
    // Predicated region
    $region26: #{tpu_custom_call.1} parent=1 // pred_check
      _
    $region27: #{tpu_custom_call.1} parent=1 // pred_check_branch
      %55 = sbr.rel (0) target = $region29
    $region28: #{tpu_custom_call.1} parent=1 // pred_region
      %56 = dma.done [#allocation6], 128
    $region29: #{tpu_custom_call.1} parent=1 // pred_fallthru
      _
    // Predicated region
    $region30: #{tpu_custom_call.1} parent=1 // pred_check
      _
    $region31: #{tpu_custom_call.1} parent=1 // pred_check_branch
      %58 = sbr.rel (0) target = $region33
    $region32: #{tpu_custom_call.1} parent=1 // pred_region
      %59 = dma.done [#allocation6], 1024
    $region33: #{tpu_custom_call.1} parent=1 // pred_fallthru
      _
    %v61 = vld [vmem:[#allocation2] sm:$0xff]
    %v62 = vpack.c.bf16 %v61, %v61
    %v63 = vld [vmem:[#allocation5] sm:$0xf]
    %v64 = vld [vmem:[#allocation5 + $0x4] sm:$0xf]
    %v65 = vld [vmem:[%s2] sm:$0x1]
    %v67 = vlaneseq
    %v68 = vshrl.u32 %v67, 7
    %v69 = vsub.s32 0, %v68
    %v70 = vrot.slane %v65, %v69
    %v74 = vunpack.c.l.b16 %v63
    %v75 = vunpack.c.l.b16 %v64
    %v76 = vpack.c.b16 %v75, %v74
    %vm78 = vcmask 130048
    %v80 = vsel %vm78, %v62, 0
    %82 = vmatprep.subr.bf16.mxu0 0
    %83 = vmatpush1.bf16.msra.mxu0 0
    %84 = vmatprep.subr.bf16.mxu0 0
    %85 = vmatpush1.bf16.msra.mxu0 0
    %86 = vmatprep.subr.bf16.mxu0 0
    %87 = vmatpush1.bf16.msra.mxu0 0
    %88 = vmatprep.subr.bf16.mxu0 0
    %89 = vmatpush1.bf16.msra.mxu0 0
    %90 = vmatprep.subr.bf16.mxu0 0
    %91 = vmatpush1.bf16.msra.mxu0 0
    %92 = vmatprep.subr.bf16.mxu0 0
    %93 = vmatpush1.bf16.msra.mxu0 0
    %94 = vmatprep.subr.bf16.mxu0 0
    %95 = vmatpush1.bf16.msra.mxu0 0
    %96 = vmatprep.subr.bf16.mxu0 0
    %97 = vmatpush1.bf16.msra.mxu0 %v76
    %98 = vmatprep.subr.bf16.mxu0 0
    %99 = vmatpush2.bf16.msra.mxu0 0
    %100 = vmatprep.subr.bf16.mxu0 0
    %101 = vmatpush2.bf16.msra.mxu0 0
    %102 = vmatprep.subr.bf16.mxu0 0
    %103 = vmatpush2.bf16.msra.mxu0 0
    %104 = vmatprep.subr.bf16.mxu0 0
    %105 = vmatpush2.bf16.msra.mxu0 0
    %106 = vmatprep.subr.bf16.mxu0 0
    %107 = vmatpush2.bf16.msra.mxu0 0
    %108 = vmatprep.subr.bf16.mxu0 0
    %109 = vmatpush2.bf16.msra.mxu0 0
    %110 = vmatprep.subr.bf16.mxu0 0
    %111 = vmatpush2.bf16.msra.mxu0 0
    %112 = vmatprep.subr.bf16.mxu0 0
    %113 = vmatpush2.bf16.msra.mxu0 0
    %114 = vmatprep.mubr.bf16.mxu0 0
    %115 = vmatmul.mubr.bf16.gmra.mxu0 %v80
    %v116 = vpop.f32.mrf.mxu0
    %v117 = vadd.f32 %v70, %v116
    %v118 = vpop.f32.mrf.mxu0
    %v119 = vpop.f32.mrf.mxu0
    %v120 = vpop.f32.mrf.mxu0
    %121 = vdwg.mxu0
    %v122 = vmax.f32 %v117, 0.0
    %v123 = vpack.c.bf16 %v122, %v122
    %v124 = vld [vmem:[#allocation7] sm:$0xf]
    %v125 = vld [vmem:[#allocation7 + $0x4] sm:$0xf]
    %v126 = vld [vmem:[#allocation7 + $0x8] sm:$0xf]
    %v127 = vld [vmem:[#allocation7 + $0xc] sm:$0xf]
    %v128 = vld [vmem:[#allocation7 + $0x10] sm:$0xf]
    %v129 = vld [vmem:[#allocation7 + $0x14] sm:$0xf]
    %v130 = vld [vmem:[#allocation7 + $0x18] sm:$0xf]
    %v131 = vld [vmem:[#allocation7 + $0x1c] sm:$0xf]
    %v132 = vld [vmem:[#allocation7 + $0x20] sm:$0xf]
    %v133 = vld [vmem:[#allocation7 + $0x24] sm:$0xf]
    %v134 = vld [vmem:[#allocation7 + $0x28] sm:$0xf]
    %v135 = vld [vmem:[#allocation7 + $0x2c] sm:$0xf]
    %v136 = vld [vmem:[#allocation7 + $0x30] sm:$0xf]
    %v137 = vld [vmem:[#allocation7 + $0x34] sm:$0xf]
    %v138 = vld [vmem:[#allocation7 + $0x38] sm:$0xf]
    %v139 = vld [vmem:[#allocation7 + $0x3c] sm:$0xf]
    %v140 = vld [vmem:[%s4] sm:$0x1]
    %v142 = vlaneseq
    %v143 = vshrl.u32 %v142, 7
    %v144 = vsub.s32 0, %v143
    %v145 = vrot.slane %v140, %v144
    %v163 = vunpack.c.l.b16 %v124
    %v164 = vunpack.c.l.b16 %v125
    %v165 = vunpack.c.l.b16 %v126
    %v166 = vunpack.c.l.b16 %v127
    %v167 = vunpack.c.l.b16 %v128
    %v168 = vunpack.c.l.b16 %v129
    %v169 = vunpack.c.l.b16 %v130
    %v170 = vunpack.c.l.b16 %v131
    %v171 = vunpack.c.l.b16 %v132
    %v172 = vunpack.c.l.b16 %v133
    %v173 = vunpack.c.l.b16 %v134
    %v174 = vunpack.c.l.b16 %v135
    %v175 = vunpack.c.l.b16 %v136
    %v176 = vunpack.c.l.b16 %v137
    %v177 = vunpack.c.l.b16 %v138
    %v178 = vunpack.c.l.b16 %v139
    %v179 = vpack.c.b16 %v164, %v163
    %v180 = vpack.c.b16 %v166, %v165
    %v181 = vpack.c.b16 %v168, %v167
    %v182 = vpack.c.b16 %v170, %v169
    %v183 = vpack.c.b16 %v172, %v171
    %v184 = vpack.c.b16 %v174, %v173
    %v185 = vpack.c.b16 %v176, %v175
    %v186 = vpack.c.b16 %v178, %v177
    %195 = vmatprep.subr.bf16.mxu0 0
    %196 = vmatpush1.bf16.msra.mxu0 %v186
    %197 = vmatprep.subr.bf16.mxu0 0
    %198 = vmatpush1.bf16.msra.mxu0 %v185
    %199 = vmatprep.subr.bf16.mxu0 0
    %200 = vmatpush1.bf16.msra.mxu0 %v184
    %201 = vmatprep.subr.bf16.mxu0 0
    %202 = vmatpush1.bf16.msra.mxu0 %v183
    %203 = vmatprep.subr.bf16.mxu0 0
    %204 = vmatpush1.bf16.msra.mxu0 %v182
    %205 = vmatprep.subr.bf16.mxu0 0
    %206 = vmatpush1.bf16.msra.mxu0 %v181
    %207 = vmatprep.subr.bf16.mxu0 0
    %208 = vmatpush1.bf16.msra.mxu0 %v180
    %209 = vmatprep.subr.bf16.mxu0 0
    %210 = vmatpush1.bf16.msra.mxu0 %v179
    %211 = vmatprep.subr.bf16.mxu0 0
    %212 = vmatpush2.bf16.msra.mxu0 0
    %213 = vmatprep.subr.bf16.mxu0 0
    %214 = vmatpush2.bf16.msra.mxu0 0
    %215 = vmatprep.subr.bf16.mxu0 0
    %216 = vmatpush2.bf16.msra.mxu0 0
    %217 = vmatprep.subr.bf16.mxu0 0
    %218 = vmatpush2.bf16.msra.mxu0 0
    %219 = vmatprep.subr.bf16.mxu0 0
    %220 = vmatpush2.bf16.msra.mxu0 0
    %221 = vmatprep.subr.bf16.mxu0 0
    %222 = vmatpush2.bf16.msra.mxu0 0
    %223 = vmatprep.subr.bf16.mxu0 0
    %224 = vmatpush2.bf16.msra.mxu0 0
    %225 = vmatprep.subr.bf16.mxu0 0
    %226 = vmatpush2.bf16.msra.mxu0 0
    %227 = vmatprep.mubr.bf16.mxu0 0
    %228 = vmatmul.mubr.bf16.gmra.mxu0 %v123
    %v229 = vpop.f32.mrf.mxu0
    %v230 = vadd.f32 %v145, %v229
    %v231 = vpop.f32.mrf.mxu0
    %v232 = vpop.f32.mrf.mxu0
    %v233 = vpop.f32.mrf.mxu0
    %234 = vdwg.mxu0
    %235 = vst [vmem:[#allocation8] sm:$0xff] %v230
    // Predicated region
    $region34: #{tpu_custom_call.1} parent=1 // pred_check
      _
    $region35: #{tpu_custom_call.1} parent=1 // pred_check_branch
      %237 = sbr.rel (0) target = $region37
    $region36: #{tpu_custom_call.1} parent=1 // pred_region
      %s239 = ssub.s32 128, 128
      %240 = vsyncadd [#allocation4], %s239
      %s242 = sshll.u32 [#allocation8], 4
      %s243 = int_to_ptr.vmem [resolvable:$true] %s242
      %245 = dma.vmem_to_hbm [thread:$0]  %s243, 128, %s5, [#allocation4]
    $region37: #{tpu_custom_call.1} parent=1 // pred_fallthru
      _
    // Predicated region
    $region38: #{tpu_custom_call.1} parent=1 // pred_check
      _
    $region39: #{tpu_custom_call.1} parent=1 // pred_check_branch
      %247 = sbr.rel (0) target = $region41
    $region40: #{tpu_custom_call.1} parent=1 // pred_region
      %248 = dma.done [#allocation4], 128
    $region41: #{tpu_custom_call.1} parent=1 // pred_fallthru
      _
    %249 = vsyncpa [#allocation3], 1
    %250 = vsyncpa [#allocation6], 1
    %251 = vsyncpa [#allocation4], 1

</llo_original>
